<compile_context>
chip_gen: v5e
topology: v5e:2x2
jax: 0.10.0
libtpu: 0.0.40
codegen_flags: <defaults>
</compile_context>

<pallas_src>
import jax
import jax.numpy as jnp
from jax.experimental import pallas as pl
from jax.experimental.pallas import tpu as pltpu

LEAKY_SLOPE = 0.01  # torch.nn.LeakyReLU default negative_slope
_MIB = 1024 * 1024


def _round_up(x, m):
    return ((x + m - 1) // m) * m


def _make_mlp_kernel(num_linear, compute_dtype):
    """Fused MLP kernel: (Linear -> LeakyReLU) * (num_linear-1) -> Linear."""

    def kernel(x_ref, *refs):
        out_ref = refs[-1]
        wb_refs = refs[:-1]  # interleaved (w0, b0, w1, b1, ...)
        # Cast to the MXU operand dtype in-kernel (x is DMA'd in its stored
        # dtype so the wrapper does not burn an extra HBM pass on the cast).
        h = x_ref[...].astype(compute_dtype)
        for i in range(num_linear):
            w = wb_refs[2 * i][...]            # (in_i, out_i) compute_dtype
            b = wb_refs[2 * i + 1][...]        # (1, out_i)    float32
            acc = jnp.dot(h, w, preferred_element_type=jnp.float32) + b
            if i < num_linear - 1:
                # LeakyReLU in f32: max(x, slope*x) is valid for 0 < slope < 1.
                acc = jnp.maximum(acc, LEAKY_SLOPE * acc)
                # TODO(synk): Dropout omitted — identity at eval time / dropout=0.
                h = acc.astype(compute_dtype)
            else:
                out_ref[...] = acc.astype(out_ref.dtype)

    return kernel


def _vmem_capacity_bytes():
    try:
        return int(pltpu.get_tpu_info().vmem_capacity_bytes)
    except Exception:
        return 64 * _MIB  # conservative (v7x per-TC VMEM)


def fc_feature_extraction(x, params, *, output_size, tile_rows=1024,
                          compute_dtype=jnp.bfloat16, out_dtype=None):
    """Runs the FCFeatureExtractionModule forward pass (eval mode).

    x: (batch, bag, input_size)
    params: list of (W, b) with W shape (in_i, out_i), b shape (1, out_i)
    compute_dtype: dtype of the MXU operands (bf16 default, or f32);
                   accumulation and elementwise math are always f32.
    returns: (batch, bag, output_size) in out_dtype (default x.dtype)
    """
    B, S, F = x.shape
    rows = B * S
    out_dtype = x.dtype if out_dtype is None else out_dtype
    num_linear = len(params)

    # ---- pad ONLY the hidden widths to lane multiples of 128 --------------
    # x keeps its real feature width F and the output keeps its real width.
    sizes = [F] + [w.shape[1] for (w, _) in params]
    padded = [F] + [_round_up(s, 128) for s in sizes[1:-1]] + [sizes[-1]]

    padded_params = []
    for li, (w, b) in enumerate(params):
        in_p, out_p = padded[li], padded[li + 1]
        wp = jnp.pad(w, ((0, in_p - w.shape[0]), (0, out_p - w.shape[1])))
        wp = wp.astype(compute_dtype)
        bp = jnp.pad(b.astype(jnp.float32), ((0, 0), (0, out_p - b.shape[1])))
        padded_params.append((wp, bp))

    # ---- row tiling --------------------------------------------------------
    # Sublane quantum of the packed compute dtype (bf16 packs 16 rows).
    quantum = 16 if jnp.dtype(compute_dtype) == jnp.dtype(jnp.bfloat16) else 8
    tile_rows = _round_up(max(quantum, min(int(tile_rows), rows)), quantum)
    # v7x: if a single tile would cover all rows and there's enough work,
    # split into (at least) 2 balanced tiles so both TensorCores are used.
    if tile_rows >= rows and rows >= 256:
        tile_rows = _round_up(pl.cdiv(rows, 2), quantum)

    # ---- VMEM budget (generation-aware) ------------------------------------
    c_bytes = jnp.dtype(compute_dtype).itemsize
    x_bytes = jnp.dtype(x.dtype).itemsize
    o_bytes = jnp.dtype(out_dtype).itemsize
    max_width = max(padded)

    def _vmem_needed(tr):
        need = 2 * tr * F * x_bytes                 # x tile, double-buffered
        need += 2 * tr * output_size * o_bytes      # out tile, double-buffered
        for (wp, bp) in padded_params:              # resident weights/biases
            # TODO(synk): single-buffer (pl.Buffered(1)) grid-invariant weights
            # for production widths; double-buffer assumed here for robustness.
            need += 2 * (wp.size * c_bytes + bp.size * 4)
        need += 2 * tr * max_width * 4              # ~2 live f32 intermediates
        return need

    vmem_usable = max(_vmem_capacity_bytes() - 16 * _MIB, 32 * _MIB)
    while _vmem_needed(tile_rows) > vmem_usable and tile_rows > quantum:
        tile_rows = _round_up(tile_rows // 2, quantum)
    vmem_limit = int(min(max(int(1.25 * _vmem_needed(tile_rows)), 16 * _MIB),
                         vmem_usable))

    rows_pad = _round_up(rows, tile_rows)
    grid = (rows_pad // tile_rows,)

    x2d = x.reshape(rows, F)
    if rows_pad > rows:
        x2d = jnp.pad(x2d, ((0, rows_pad - rows), (0, 0)))

    kernel = _make_mlp_kernel(num_linear, compute_dtype)

    # x block: last dim == full array dim (F) -> legal even if F % 128 != 0.
    in_specs = [pl.BlockSpec((tile_rows, F), lambda i: (i, 0))]
    flat_args = [x2d]
    # Weights/biases are grid-invariant (constant index_map): DMA'd once.
    for (wp, bp) in padded_params:
        in_specs.append(pl.BlockSpec(wp.shape, lambda i: (0, 0)))
        in_specs.append(pl.BlockSpec(bp.shape, lambda i: (0, 0)))
        flat_args.append(wp)
        flat_args.append(bp)

    # Output at its real width: no padded writeback slab, no slice pass after.
    out_specs = pl.BlockSpec((tile_rows, output_size), lambda i: (i, 0))

    out = pl.pallas_call(
        kernel,
        out_shape=jax.ShapeDtypeStruct((rows_pad, output_size), out_dtype),
        grid_spec=pltpu.PrefetchScalarGridSpec(
            num_scalar_prefetch=0,
            grid=grid,
            in_specs=in_specs,
            out_specs=out_specs,
        ),
        compiler_params=pltpu.CompilerParams(
            dimension_semantics=("parallel",),   # v7x: row tiles over 2 TCs
            vmem_limit_bytes=vmem_limit,
        ),
    )(*flat_args)

    if rows_pad > rows:
        out = out[:rows]
    return out.reshape(B, S, output_size)


def init_params(key, input_size, hidden_sizes, output_size):
    """Deterministic Linear params. W stored as (in, out) == torch W.T."""
    sizes = [input_size] + list(hidden_sizes) + [output_size]
    params = []
    for i in range(len(sizes) - 1):
        fan_in, fan_out = sizes[i], sizes[i + 1]
        key, kw, kb = jax.random.split(key, 3)
        bound = 1.0 / jnp.sqrt(fan_in)
        w = jax.random.uniform(kw, (fan_in, fan_out), jnp.float32, -bound, bound)
        b = jax.random.uniform(kb, (1, fan_out), jnp.float32, -bound, bound)
        params.append((w, b))
    return params


def reference_forward(x, params):
    """Pure-JAX reference of the PyTorch forward (eval mode)."""
    h = x
    n = len(params)
    for i, (w, b) in enumerate(params):
        h = h @ w + b
        if i < n - 1:
            h = jnp.where(h > 0, h, LEAKY_SLOPE * h)
    return h


if __name__ == "__main__":
    # Module config (flatten=False, dropout=0, activation='leakyrelu')
    input_size = 32
    hidden_sizes = [64, 48]
    output_size = 16

    key = jax.random.PRNGKey(0)
    kx, kx2, kp = jax.random.split(key, 3)
    params = init_params(kp, input_size, hidden_sizes, output_size)

    # --- case 1: toy shape (batch=2, bag=8) -> rows=16, single row tile ------
    x = jax.random.normal(kx, (2, 8, input_size), jnp.float32)
    ref = reference_forward(x, params)

    # f32 MXU operands: tight tolerance.
    out_f32 = fc_feature_extraction(x, params, output_size=output_size,
                                    compute_dtype=jnp.float32)
    out_f32 = jax.block_until_ready(out_f32)
    assert out_f32.shape == (2, 8, output_size)
    assert jnp.allclose(out_f32, ref, atol=1e-4, rtol=1e-4)

    # Default bf16 MXU operands (f32 accumulation) -> looser tolerance.
    out_bf16 = fc_feature_extraction(x, params, output_size=output_size)
    out_bf16 = jax.block_until_ready(out_bf16)
    assert out_bf16.shape == (2, 8, output_size)
    assert jnp.allclose(out_bf16, ref, atol=5e-2, rtol=5e-2)

    # --- case 2: rows=400 -> tile clamp splits into 2 balanced row tiles -----
    x2 = jax.random.normal(kx2, (4, 100, input_size), jnp.float32)
    ref2 = reference_forward(x2, params)
    out2 = fc_feature_extraction(x2, params, output_size=output_size,
                                 compute_dtype=jnp.float32)
    out2 = jax.block_until_ready(out2)
    assert out2.shape == (4, 100, output_size)
    assert jnp.allclose(out2, ref2, atol=1e-4, rtol=1e-4)

    # Explicit small tile to exercise a multi-step grid with a padded tail.
    out3 = fc_feature_extraction(x2, params, output_size=output_size,
                                 compute_dtype=jnp.float32, tile_rows=128)
    out3 = jax.block_until_ready(out3)
    assert jnp.allclose(out3, ref2, atol=1e-4, rtol=1e-4)

    print("KERNEL_OK")
</pallas_src>

<mosaic_0001>
module attributes {stable_mosaic.version = 11 : i64} {
  func.func @kernel(%arg0: i32, %arg1: memref<16x32xf32, #tpu.memory_space<vmem>>, %arg2: memref<32x128xf32, #tpu.memory_space<vmem>>, %arg3: memref<1x128xf32, #tpu.memory_space<vmem>>, %arg4: memref<128x128xf32, #tpu.memory_space<vmem>>, %arg5: memref<1x128xf32, #tpu.memory_space<vmem>>, %arg6: memref<128x16xf32, #tpu.memory_space<vmem>>, %arg7: memref<1x16xf32, #tpu.memory_space<vmem>>, %arg8: memref<16x16xf32, #tpu.memory_space<vmem>>) attributes {dimension_semantics = [#tpu.dimension_semantics<parallel>], iteration_bounds = array<i64: 1>, scalar_prefetch = 0 : i64, scratch_operands = 0 : i64, tpu.core_type = #tpu.core_type<tc>, window_params = [{transform_indices = @transform_0, window_bounds = array<i64: 16, 32>}, {pipeline_mode = #tpu.pipeline_mode<synchronous>, transform_indices = @transform_1, window_bounds = array<i64: 32, 128>}, {pipeline_mode = #tpu.pipeline_mode<synchronous>, transform_indices = @transform_2, window_bounds = array<i64: 1, 128>}, {pipeline_mode = #tpu.pipeline_mode<synchronous>, transform_indices = @transform_3, window_bounds = array<i64: 128, 128>}, {pipeline_mode = #tpu.pipeline_mode<synchronous>, transform_indices = @transform_4, window_bounds = array<i64: 1, 128>}, {pipeline_mode = #tpu.pipeline_mode<synchronous>, transform_indices = @transform_5, window_bounds = array<i64: 128, 16>}, {pipeline_mode = #tpu.pipeline_mode<synchronous>, transform_indices = @transform_6, window_bounds = array<i64: 1, 16>}, {transform_indices = @transform_7, window_bounds = array<i64: 16, 16>}]} {
    %c0 = arith.constant 0 : index
    %c0_0 = arith.constant 0 : index
    %0 = vector.load %arg1[%c0, %c0_0] : memref<16x32xf32, #tpu.memory_space<vmem>>, vector<16x32xf32>
    %c0_1 = arith.constant 0 : index
    %c0_2 = arith.constant 0 : index
    %1 = vector.load %arg2[%c0_1, %c0_2] : memref<32x128xf32, #tpu.memory_space<vmem>>, vector<32x128xf32>
    %c0_3 = arith.constant 0 : index
    %c0_4 = arith.constant 0 : index
    %2 = vector.load %arg3[%c0_3, %c0_4] : memref<1x128xf32, #tpu.memory_space<vmem>>, vector<1x128xf32>
    %cst = arith.constant dense<0.000000e+00> : vector<16x128xf32>
    %3 = tpu.matmul %0, %1, %cst {dimension_numbers = #tpu.dot_dimension_numbers<[1], [0], [0], [1], [0, 0, 1, 1], [], []>} : vector<16x32xf32>, vector<32x128xf32>, vector<16x128xf32> -> vector<16x128xf32>
    %4 = vector.broadcast %2 : vector<1x128xf32> to vector<16x128xf32>
    %5 = arith.addf %3, %4 : vector<16x128xf32>
    %cst_5 = arith.constant 0.00999999977 : f32
    %6 = vector.broadcast %cst_5 : f32 to vector<16x128xf32>
    %7 = arith.mulf %6, %5 : vector<16x128xf32>
    %8 = arith.maximumf %5, %7 : vector<16x128xf32>
    %c0_6 = arith.constant 0 : index
    %c0_7 = arith.constant 0 : index
    %9 = vector.load %arg4[%c0_6, %c0_7] : memref<128x128xf32, #tpu.memory_space<vmem>>, vector<128x128xf32>
    %c0_8 = arith.constant 0 : index
    %c0_9 = arith.constant 0 : index
    %10 = vector.load %arg5[%c0_8, %c0_9] : memref<1x128xf32, #tpu.memory_space<vmem>>, vector<1x128xf32>
    %cst_10 = arith.constant dense<0.000000e+00> : vector<16x128xf32>
    %11 = tpu.matmul %8, %9, %cst_10 {dimension_numbers = #tpu.dot_dimension_numbers<[1], [0], [0], [1], [0, 0, 1, 1], [], []>} : vector<16x128xf32>, vector<128x128xf32>, vector<16x128xf32> -> vector<16x128xf32>
    %12 = vector.broadcast %10 : vector<1x128xf32> to vector<16x128xf32>
    %13 = arith.addf %11, %12 : vector<16x128xf32>
    %cst_11 = arith.constant 0.00999999977 : f32
    %14 = vector.broadcast %cst_11 : f32 to vector<16x128xf32>
    %15 = arith.mulf %14, %13 : vector<16x128xf32>
    %16 = arith.maximumf %13, %15 : vector<16x128xf32>
    %c0_12 = arith.constant 0 : index
    %c0_13 = arith.constant 0 : index
    %17 = vector.load %arg6[%c0_12, %c0_13] : memref<128x16xf32, #tpu.memory_space<vmem>>, vector<128x16xf32>
    %c0_14 = arith.constant 0 : index
    %c0_15 = arith.constant 0 : index
    %18 = vector.load %arg7[%c0_14, %c0_15] : memref<1x16xf32, #tpu.memory_space<vmem>>, vector<1x16xf32>
    %cst_16 = arith.constant dense<0.000000e+00> : vector<16x16xf32>
    %19 = tpu.matmul %16, %17, %cst_16 {dimension_numbers = #tpu.dot_dimension_numbers<[1], [0], [0], [1], [0, 0, 1, 1], [], []>} : vector<16x128xf32>, vector<128x16xf32>, vector<16x16xf32> -> vector<16x16xf32>
    %20 = vector.broadcast %18 : vector<1x16xf32> to vector<16x16xf32>
    %21 = arith.addf %19, %20 : vector<16x16xf32>
    %c0_17 = arith.constant 0 : index
    %c0_18 = arith.constant 0 : index
    %22 = vector.load %arg8[%c0_17, %c0_18] : memref<16x16xf32, #tpu.memory_space<vmem>>, vector<16x16xf32>
    tpu.vector_store %arg8[%c0_17, %c0_18], %21 {strides = array<i32>} : memref<16x16xf32, #tpu.memory_space<vmem>>, vector<16x16xf32>,
    return
  }
  func.func @transform_0(%arg0: i32) -> (i32, i32) {
    %c0_i32 = arith.constant 0 : i32
    %c0_i32_0 = arith.constant 0 : i32
    return %arg0, %c0_i32 : i32, i32
  }
  func.func @transform_1(%arg0: i32) -> (i32, i32) {
    %c0_i32 = arith.constant 0 : i32
    %c0_i32_0 = arith.constant 0 : i32
    %c0_i32_1 = arith.constant 0 : i32
    return %c0_i32, %c0_i32_0 : i32, i32
  }
  func.func @transform_2(%arg0: i32) -> (i32, i32) {
    %c0_i32 = arith.constant 0 : i32
    %c0_i32_0 = arith.constant 0 : i32
    %c0_i32_1 = arith.constant 0 : i32
    return %c0_i32, %c0_i32_0 : i32, i32
  }
  func.func @transform_3(%arg0: i32) -> (i32, i32) {
    %c0_i32 = arith.constant 0 : i32
    %c0_i32_0 = arith.constant 0 : i32
    %c0_i32_1 = arith.constant 0 : i32
    return %c0_i32, %c0_i32_0 : i32, i32
  }
  func.func @transform_4(%arg0: i32) -> (i32, i32) {
    %c0_i32 = arith.constant 0 : i32
    %c0_i32_0 = arith.constant 0 : i32
    %c0_i32_1 = arith.constant 0 : i32
    return %c0_i32, %c0_i32_0 : i32, i32
  }
  func.func @transform_5(%arg0: i32) -> (i32, i32) {
    %c0_i32 = arith.constant 0 : i32
    %c0_i32_0 = arith.constant 0 : i32
    %c0_i32_1 = arith.constant 0 : i32
    return %c0_i32, %c0_i32_0 : i32, i32
  }
  func.func @transform_6(%arg0: i32) -> (i32, i32) {
    %c0_i32 = arith.constant 0 : i32
    %c0_i32_0 = arith.constant 0 : i32
    %c0_i32_1 = arith.constant 0 : i32
    return %c0_i32, %c0_i32_0 : i32, i32
  }
  func.func @transform_7(%arg0: i32) -> (i32, i32) {
    %c0_i32 = arith.constant 0 : i32
    %c0_i32_0 = arith.constant 0 : i32
    return %arg0, %c0_i32 : i32, i32
  }
}

</mosaic_0001>

<llo_original>
// kernel: tpu_custom_call.1
$region0: #{tpu_custom_call.1}
  #allocation0 [shape = 'u32[]', space=smem, size = 0x4, offset = 0x4, fixed_abs, tag = 'smem constant byte address 0x4 - core index']
  #allocation1 [shape = 'u32[72,128]{1,0:T(1,128)}', space=vmem, size = 0x9000, scoped, tag = 'internal scratch']
  %s0 = inlined_call_operand.vmem [shape: f32[16,32], index: 0, kind: input, shape index: {}]
  %s1 = inlined_call_operand.hbm [shape: f32[32,128], index: 1, kind: input, shape index: {}]
  %s2 = inlined_call_operand.vmem [shape: f32[1,128], index: 2, kind: input, shape index: {}]
  %s3 = inlined_call_operand.vmem [shape: f32[128,128], index: 3, kind: input, shape index: {}]
  %s4 = inlined_call_operand.vmem [shape: f32[1,128], index: 4, kind: input, shape index: {}]
  %s5 = inlined_call_operand.vmem [shape: f32[128,16], index: 5, kind: input, shape index: {}]
  %s6 = inlined_call_operand.vmem [shape: f32[1,16], index: 6, kind: input, shape index: {}]
  %s7 = inlined_call_operand.hbm [shape: f32[16,16], index: 7, kind: output, shape index: {}]
  %s8 = sld [smem:[#allocation0]]
  $region42: #{tpu_custom_call.1} parent=0
    _
  %s10 = ssub.s32 1, %s8
  %s11 = scalar_select 0, %s10, %s8
  $region1: #{tpu_custom_call.1} parent=0
    #allocation2 [shape = 'u8[16384]{0}', space=vmem, size = 0x4000, scoped, tag = 'input window, operand 1, single buffered']
    #allocation3 [shape = 's32[1]{0}', space=sflag, size = 0x4, scoped, tag = 'scoped memory for tpu_custom_call.1']
    #allocation4 [shape = 's32[1]{0}', space=sflag, size = 0x4, scoped, tag = 'scoped memory for tpu_custom_call.1']
    #allocation5 [shape = 'u8[8192]{0}', space=vmem, size = 0x2000, scoped, tag = 'output window, operand 0, single buffered']
    %12 = vsyncpa [#allocation3], 0
    %13 = vsyncpa [#allocation4], 0
    // Predicated region
    $region2: #{tpu_custom_call.1} parent=1 // pred_check
      _
    $region3: #{tpu_custom_call.1} parent=1 // pred_check_branch
      %15 = sbr.rel (0) target = $region5
    $region4: #{tpu_custom_call.1} parent=1 // pred_region
      _
    $region5: #{tpu_custom_call.1} parent=1 // pred_fallthru
      _
    // Predicated region
    $region6: #{tpu_custom_call.1} parent=1 // pred_check
      _
    $region7: #{tpu_custom_call.1} parent=1 // pred_check_branch
      %17 = sbr.rel (0) target = $region9
    $region8: #{tpu_custom_call.1} parent=1 // pred_region
      %19 = vsyncadd [#allocation3], 0
      %s20 = sshll.u32 %s1, 4
      %s21 = int_to_ptr.hbm [resolvable:$true] %s20
      %s22 = sshll.u32 [#allocation2], 4
      %s23 = int_to_ptr.vmem [resolvable:$true] %s22
      %28 = dma.hbm_to_vmem [thread:$0]  %s21, 512, %s23, [#allocation3], 128, 128, 8
    $region9: #{tpu_custom_call.1} parent=1 // pred_fallthru
      _
    // Predicated region
    $region10: #{tpu_custom_call.1} parent=1 // pred_check
      _
    $region11: #{tpu_custom_call.1} parent=1 // pred_check_branch
      %30 = sbr.rel (0) target = $region13
    $region12: #{tpu_custom_call.1} parent=1 // pred_region
      _
    $region13: #{tpu_custom_call.1} parent=1 // pred_fallthru
      _
    // Predicated region
    $region14: #{tpu_custom_call.1} parent=1 // pred_check
      _
    $region15: #{tpu_custom_call.1} parent=1 // pred_check_branch
      %32 = sbr.rel (0) target = $region17
    $region16: #{tpu_custom_call.1} parent=1 // pred_region
      _
    $region17: #{tpu_custom_call.1} parent=1 // pred_fallthru
      _
    // Predicated region
    $region18: #{tpu_custom_call.1} parent=1 // pred_check
      _
    $region19: #{tpu_custom_call.1} parent=1 // pred_check_branch
      %34 = sbr.rel (0) target = $region21
    $region20: #{tpu_custom_call.1} parent=1 // pred_region
      _
    $region21: #{tpu_custom_call.1} parent=1 // pred_fallthru
      _
    // Predicated region
    $region22: #{tpu_custom_call.1} parent=1 // pred_check
      _
    $region23: #{tpu_custom_call.1} parent=1 // pred_check_branch
      %36 = sbr.rel (0) target = $region25
    $region24: #{tpu_custom_call.1} parent=1 // pred_region
      _
    $region25: #{tpu_custom_call.1} parent=1 // pred_fallthru
      _
    // Predicated region
    $region26: #{tpu_custom_call.1} parent=1 // pred_check
      _
    $region27: #{tpu_custom_call.1} parent=1 // pred_check_branch
      %38 = sbr.rel (0) target = $region29
    $region28: #{tpu_custom_call.1} parent=1 // pred_region
      _
    $region29: #{tpu_custom_call.1} parent=1 // pred_fallthru
      _
    // Predicated region
    $region30: #{tpu_custom_call.1} parent=1 // pred_check
      _
    $region31: #{tpu_custom_call.1} parent=1 // pred_check_branch
      %40 = sbr.rel (0) target = $region33
    $region32: #{tpu_custom_call.1} parent=1 // pred_region
      %42 = dma.done [#allocation3], 512
    $region33: #{tpu_custom_call.1} parent=1 // pred_fallthru
      _
    %v43 = vld [vmem:[%s0] sm:$0xff]
    %v44 = vld [vmem:[%s0 + $0x8] sm:$0xff]
    %v45 = vld [vmem:[#allocation2] sm:$0xff]
    %v46 = vld [vmem:[#allocation2 + $0x8] sm:$0xff]
    %v47 = vld [vmem:[#allocation2 + $0x10] sm:$0xff]
    %v48 = vld [vmem:[#allocation2 + $0x18] sm:$0xff]
    %v49 = vld [vmem:[%s2] sm:$0x1]
    %v51 = vperm.slane %v49, 0
    %vm53 = vcmask 261120
    %v55 = vsel %vm53, %v43, 0
    %v58 = vsel %vm53, %v44, 0
    %60 = vmatpush.msra.mxu0 0.0
    %61 = vmatpush.msra.mxu0 0.0
    %62 = vmatpush.msra.mxu0 0.0
    %63 = vmatpush.msra.mxu0 0.0
    %64 = vmatpush.msra.mxu0 0.0
    %65 = vmatpush.msra.mxu0 0.0
    %66 = vmatpush.msra.mxu0 0.0
    %67 = vmatpush.msra.mxu0 0.0
    %68 = vmatpush.msra.mxu0 0.0
    %69 = vmatpush.msra.mxu0 0.0
    %70 = vmatpush.msra.mxu0 0.0
    %71 = vmatpush.msra.mxu0 0.0
    %72 = vmatpush.msra.mxu0 %v48
    %73 = vmatpush.msra.mxu0 %v47
    %74 = vmatpush.msra.mxu0 %v46
    %75 = vmatpush.msra.mxu0 %v45
    %76 = vmatmul.f32.gmra.mxu0 %v55
    %v77 = vpop.f32.mrf.mxu0
    %v78 = vadd.f32 %v51, %v77
    %79 = vmatmul.f32.gmra.mxu0 %v58
    %v80 = vpop.f32.mrf.mxu0
    %v81 = vadd.f32 %v51, %v80
    %82 = vdwg.mxu0
    %v83 = vmul.f32 %v78, 0.01
    %v84 = vmul.f32 %v81, 0.01
    %v85 = vmax.f32 %v78, %v83
    %v86 = vmax.f32 %v81, %v84
    %v87 = vld [vmem:[%s3] sm:$0xff]
    %v88 = vld [vmem:[%s3 + $0x8] sm:$0xff]
    %v89 = vld [vmem:[%s3 + $0x10] sm:$0xff]
    %v90 = vld [vmem:[%s3 + $0x18] sm:$0xff]
    %v91 = vld [vmem:[%s3 + $0x20] sm:$0xff]
    %v92 = vld [vmem:[%s3 + $0x28] sm:$0xff]
    %v93 = vld [vmem:[%s3 + $0x30] sm:$0xff]
    %v94 = vld [vmem:[%s3 + $0x38] sm:$0xff]
    %v95 = vld [vmem:[%s3 + $0x40] sm:$0xff]
    %v96 = vld [vmem:[%s3 + $0x48] sm:$0xff]
    %v97 = vld [vmem:[%s3 + $0x50] sm:$0xff]
    %v98 = vld [vmem:[%s3 + $0x58] sm:$0xff]
    %v99 = vld [vmem:[%s3 + $0x60] sm:$0xff]
    %v100 = vld [vmem:[%s3 + $0x68] sm:$0xff]
    %v101 = vld [vmem:[%s3 + $0x70] sm:$0xff]
    %v102 = vld [vmem:[%s3 + $0x78] sm:$0xff]
    %v103 = vld [vmem:[%s4] sm:$0x1]
    %v105 = vperm.slane %v103, 0
    %107 = vmatpush.msra.mxu0 %v102
    %108 = vmatpush.msra.mxu0 %v101
    %109 = vmatpush.msra.mxu0 %v100
    %110 = vmatpush.msra.mxu0 %v99
    %111 = vmatpush.msra.mxu0 %v98
    %112 = vmatpush.msra.mxu0 %v97
    %113 = vmatpush.msra.mxu0 %v96
    %114 = vmatpush.msra.mxu0 %v95
    %115 = vmatpush.msra.mxu0 %v94
    %116 = vmatpush.msra.mxu0 %v93
    %117 = vmatpush.msra.mxu0 %v92
    %118 = vmatpush.msra.mxu0 %v91
    %119 = vmatpush.msra.mxu0 %v90
    %120 = vmatpush.msra.mxu0 %v89
    %121 = vmatpush.msra.mxu0 %v88
    %122 = vmatpush.msra.mxu0 %v87
    %123 = vmatmul.f32.gmra.mxu0 %v85
    %v124 = vpop.f32.mrf.mxu0
    %v125 = vadd.f32 %v105, %v124
    %126 = vmatmul.f32.gmra.mxu0 %v86
    %v127 = vpop.f32.mrf.mxu0
    %v128 = vadd.f32 %v105, %v127
    %129 = vdwg.mxu0
    %v130 = vmul.f32 %v125, 0.01
    %v131 = vmul.f32 %v128, 0.01
    %v132 = vmax.f32 %v125, %v130
    %v133 = vmax.f32 %v128, %v131
    %v134 = vld [vmem:[%s5] sm:$0xff]
    %v135 = vld [vmem:[%s5 + $0x8] sm:$0xff]
    %v136 = vld [vmem:[%s5 + $0x10] sm:$0xff]
    %v137 = vld [vmem:[%s5 + $0x18] sm:$0xff]
    %v138 = vld [vmem:[%s5 + $0x20] sm:$0xff]
    %v139 = vld [vmem:[%s5 + $0x28] sm:$0xff]
    %v140 = vld [vmem:[%s5 + $0x30] sm:$0xff]
    %v141 = vld [vmem:[%s5 + $0x38] sm:$0xff]
    %v142 = vld [vmem:[%s5 + $0x40] sm:$0xff]
    %v143 = vld [vmem:[%s5 + $0x48] sm:$0xff]
    %v144 = vld [vmem:[%s5 + $0x50] sm:$0xff]
    %v145 = vld [vmem:[%s5 + $0x58] sm:$0xff]
    %v146 = vld [vmem:[%s5 + $0x60] sm:$0xff]
    %v147 = vld [vmem:[%s5 + $0x68] sm:$0xff]
    %v148 = vld [vmem:[%s5 + $0x70] sm:$0xff]
    %v149 = vld [vmem:[%s5 + $0x78] sm:$0xff]
    %v150 = vld [vmem:[%s6] sm:$0x1]
    %v152 = vperm.slane %v150, 0
    %154 = vmatpush.msra.mxu0 %v149
    %155 = vmatpush.msra.mxu0 %v148
    %156 = vmatpush.msra.mxu0 %v147
    %157 = vmatpush.msra.mxu0 %v146
    %158 = vmatpush.msra.mxu0 %v145
    %159 = vmatpush.msra.mxu0 %v144
    %160 = vmatpush.msra.mxu0 %v143
    %161 = vmatpush.msra.mxu0 %v142
    %162 = vmatpush.msra.mxu0 %v141
    %163 = vmatpush.msra.mxu0 %v140
    %164 = vmatpush.msra.mxu0 %v139
    %165 = vmatpush.msra.mxu0 %v138
    %166 = vmatpush.msra.mxu0 %v137
    %167 = vmatpush.msra.mxu0 %v136
    %168 = vmatpush.msra.mxu0 %v135
    %169 = vmatpush.msra.mxu0 %v134
    %170 = vmatmul.f32.gmra.mxu0 %v132
    %v171 = vpop.f32.mrf.mxu0
    %v172 = vadd.f32 %v152, %v171
    %173 = vmatmul.f32.gmra.mxu0 %v133
    %v174 = vpop.f32.mrf.mxu0
    %v175 = vadd.f32 %v152, %v174
    %176 = vdwg.mxu0
    %vm177 = vcmask 130048
    %178 = vst.msk [vmem:[#allocation5] sm:$0xff] %vm177, %v172
    %179 = vst.msk [vmem:[#allocation5 + $0x8] sm:$0xff] %vm177, %v175
    // Predicated region
    $region34: #{tpu_custom_call.1} parent=1 // pred_check
      _
    $region35: #{tpu_custom_call.1} parent=1 // pred_check_branch
      %181 = sbr.rel (0) target = $region37
    $region36: #{tpu_custom_call.1} parent=1 // pred_region
      %183 = vsyncadd [#allocation4], 0
      %s184 = sshll.u32 [#allocation5], 4
      %s185 = int_to_ptr.vmem [resolvable:$true] %s184
      %s186 = sshll.u32 %s7, 4
      %s187 = int_to_ptr.hbm [resolvable:$true] %s186
      %192 = dma.vmem_to_hbm [thread:$0]  %s185, 256, %s187, [#allocation4], 128, 128, 8
    $region37: #{tpu_custom_call.1} parent=1 // pred_fallthru
      _
    // Predicated region
    $region38: #{tpu_custom_call.1} parent=1 // pred_check
      _
    $region39: #{tpu_custom_call.1} parent=1 // pred_check_branch
      %194 = sbr.rel (0) target = $region41
    $region40: #{tpu_custom_call.1} parent=1 // pred_region
      %196 = dma.done [#allocation4], 256
    $region41: #{tpu_custom_call.1} parent=1 // pred_fallthru
      _
    %197 = vsyncpa [#allocation3], 1
    %198 = vsyncpa [#allocation4], 1

</llo_original>
